<compile_context>
chip_gen: v6e
topology: v6e:2x2x1
jax: 0.10.0
libtpu: 0.0.40
codegen_flags: <defaults>
</compile_context>

<pallas_src>
import functools
import math

import jax
import jax.numpy as jnp
from jax import lax
from jax.experimental import pallas as pl
from jax.experimental.pallas import tpu as pltpu


_MIB = 1024 * 1024
_MAX_ROW_TILE = 4096          # per-grid-step row cap (VMEM budget is the real limit)


def _round_up(a, b):
    return -(-a // b) * b


def _vmem_capacity_bytes():
    """Physical VMEM per core; fall back to the smallest generation (v7x, 64 MiB)."""
    try:
        cap = int(getattr(pltpu.get_tpu_info(), "vmem_capacity_bytes", 0))
        if cap > 0:
            return cap
    except Exception:
        pass
    return 64 * _MIB


def _budgets():
    """(vmem_limit_bytes, per-pass tile budget, fused-path max array bytes)."""
    cap = _vmem_capacity_bytes()
    vmem_limit = max(32 * _MIB, min(int(cap * 0.6), 96 * _MIB))   # v7x ~38MiB, v5e/v6e ~77MiB
    tile_budget = min(vmem_limit // 2, 32 * _MIB)
    fuse_max = min(vmem_limit // 6, 16 * _MIB)                    # ~6MiB v7x, ~13MiB v5e/v6e
    return vmem_limit, tile_budget, fuse_max


# --------------------------------------------------------------------------
# Kernels
# --------------------------------------------------------------------------
def _fused_kernel(x_ref, gamma_ref, beta_ref, o_ref, *, inv_n, eps):
    """Whole-array-in-VMEM BatchNorm: stats + normalize in one pass."""
    xt = x_ref[...].astype(jnp.float32)
    mean = jnp.sum(xt, axis=0, keepdims=True) * inv_n
    # NOTE: E[x^2] - E[x]^2 can cancel for large-mean data; clamp to >= 0.
    var = jnp.maximum(jnp.sum(xt * xt, axis=0, keepdims=True) * inv_n
                      - mean * mean, 0.0)
    scale = gamma_ref[...] * lax.rsqrt(var + eps)
    shift = beta_ref[...] - mean * scale
    o_ref[...] = (xt * scale + shift).astype(o_ref.dtype)


def _stats_kernel(x_ref, sum_ref, sq_ref, *, tiles_per_split, row_tile,
                  n_rows, need_mask):
    """Accumulate (8, D) partial sums / sums-of-squares with pure VPU adds.

    Ragged / duplicated (clamped) tiles are zero-masked using the global row
    index, so no host-side padding is ever needed.
    """
    @pl.when(pl.program_id(1) == 0)
    def _():
        sum_ref[...] = jnp.zeros_like(sum_ref)
        sq_ref[...] = jnp.zeros_like(sq_ref)

    xt = x_ref[...].astype(jnp.float32)
    if need_mask:
        tile_idx = pl.program_id(0) * tiles_per_split + pl.program_id(1)
        rows = tile_idx * row_tile + lax.broadcasted_iota(jnp.int32, xt.shape, 0)
        xt = jnp.where(rows < n_rows, xt, 0.0)
    r = xt.shape[0] // 8
    xg = xt.reshape(r, 8, xt.shape[1])          # regroup whole (8, D) vreg tiles
    sum_ref[...] += jnp.sum(xg, axis=0)         # elementwise vreg adds, no XLU
    sq_ref[...] += jnp.sum(xg * xg, axis=0)


def _norm_kernel(x_ref, scale_ref, shift_ref, o_ref):
    """y = x * scale + shift with precomputed (1, D) scale / shift."""
    xt = x_ref[...].astype(jnp.float32)
    o_ref[...] = (xt * scale_ref[...] + shift_ref[...]).astype(o_ref.dtype)


# --------------------------------------------------------------------------
# Wrappers
# --------------------------------------------------------------------------
def _seq_bn_fused(flat, gamma, beta, eps, vmem_limit):
    n, d = flat.shape
    gamma2 = gamma.reshape(1, d).astype(jnp.float32)
    beta2 = beta.reshape(1, d).astype(jnp.float32)
    # Grid-less call: whole arrays are placed in VMEM once (no double buffering).
    return pl.pallas_call(
        functools.partial(_fused_kernel, inv_n=1.0 / n, eps=eps),
        out_shape=jax.ShapeDtypeStruct((n, d), flat.dtype),
        compiler_params=pltpu.CompilerParams(vmem_limit_bytes=vmem_limit),
    )(flat, gamma2, beta2)


def _seq_bn_forward(x, gamma, beta, *, eps=1e-5, fused=None, max_row_tile=None):
    """SeqBN forward: BatchNorm1d (training-mode batch stats) over the last dim."""
    d = x.shape[-1]
    assert gamma.shape == (d,) and beta.shape == (d,)
    orig_shape = x.shape

    flat = x.reshape(-1, d)                      # (N, D) glue (free, contiguous)
    n = flat.shape[0]
    itemsize = jnp.dtype(x.dtype).itemsize
    vmem_limit, tile_budget, fuse_max = _budgets()

    if fused is None:
        fused = (n * d * itemsize) <= fuse_max
    if fused:
        return _seq_bn_fused(flat, gamma, beta, eps, vmem_limit).reshape(orig_shape)

    # ---- lane repack: group g rows into one lane-dense row of lcm(d,128) lanes ----
    g = 1
    if d % 128 != 0:
        l = math.lcm(d, 128)
        if l <= 2048 and n % (l // d) == 0:      # reshape stays a free view
            g = l // d
    d_lanes = g * d
    n_rows = n // g
    xr = flat.reshape(n_rows, d_lanes)           # contiguous repack (metadata only)

    def pick_row_tile(bytes_per_row):
        rt = tile_budget // max(bytes_per_row, 1)
        rt = max(8, min((rt // 8) * 8, _MAX_ROW_TILE, _round_up(n_rows, 8)))
        if max_row_tile is not None:
            rt = max(8, min(rt, (max_row_tile // 8) * 8))
        return rt

    # Pass 1: 2x double-buffered input + ~3 f32 temps/elem (outputs are tiny).
    row_tile1 = pick_row_tile(d_lanes * (2 * itemsize + 12))
    # Pass 2: 2x input + 2x output + ~2 f32 temps/elem.
    row_tile2 = pick_row_tile(d_lanes * (4 * itemsize + 8))

    # ---- pass 1: per-lane partial sums / sums-of-squares ----
    n_tiles = -(-n_rows // row_tile1)
    # 2-way split lets v7x's two TensorCores share the reduction.  Enabled only
    # when it costs (nearly) nothing: even tile count => zero waste; otherwise
    # at most one duplicated (fully masked) tile, accepted only for >= 9 tiles.
    if n_tiles >= 2 and (n_tiles % 2 == 0 or n_tiles >= 9):
        n_splits = 2
    else:
        n_splits = 1
    tiles_per_split = -(-n_tiles // n_splits)
    need_mask = n_splits * tiles_per_split * row_tile1 > n_rows
    last_blk = n_tiles - 1

    sums, sqs = pl.pallas_call(
        functools.partial(_stats_kernel, tiles_per_split=tiles_per_split,
                          row_tile=row_tile1, n_rows=n_rows, need_mask=need_mask),
        out_shape=(
            jax.ShapeDtypeStruct((n_splits * 8, d_lanes), jnp.float32),
            jax.ShapeDtypeStruct((n_splits * 8, d_lanes), jnp.float32),
        ),
        grid_spec=pltpu.PrefetchScalarGridSpec(
            num_scalar_prefetch=0,
            grid=(n_splits, tiles_per_split),
            in_specs=[pl.BlockSpec(
                (row_tile1, d_lanes),
                lambda s, i: (jnp.minimum(s * tiles_per_split + i, last_blk), 0))],
            out_specs=(
                pl.BlockSpec((8, d_lanes), lambda s, i: (s, 0)),
                pl.BlockSpec((8, d_lanes), lambda s, i: (s, 0)),
            ),
        ),
        compiler_params=pltpu.CompilerParams(
            dimension_semantics=("parallel", "arbitrary"),
            vmem_limit_bytes=vmem_limit),
    )(xr)

    # ---- tiny fold + scale/shift precompute (few-KiB arrays) ----
    inv_n = 1.0 / n                              # divide by TRUE row count
    sum_f = sums.reshape(n_splits * 8, g, d).sum(axis=(0, 1))
    sq_f = sqs.reshape(n_splits * 8, g, d).sum(axis=(0, 1))
    mean = sum_f * inv_n
    var = jnp.maximum(sq_f * inv_n - mean * mean, 0.0)
    scale = gamma.astype(jnp.float32) * lax.rsqrt(var + eps)
    shift = beta.astype(jnp.float32) - mean * scale
    scale_l = jnp.tile(scale, g).reshape(1, d_lanes)
    shift_l = jnp.tile(shift, g).reshape(1, d_lanes)

    # ---- pass 2: single FMA per element; ragged last block handled by pipeline ----
    n_tiles2 = -(-n_rows // row_tile2)
    flat_out = pl.pallas_call(
        _norm_kernel,
        out_shape=jax.ShapeDtypeStruct((n_rows, d_lanes), x.dtype),
        grid_spec=pltpu.PrefetchScalarGridSpec(
            num_scalar_prefetch=0,
            grid=(n_tiles2,),
            in_specs=[
                pl.BlockSpec((row_tile2, d_lanes), lambda i: (i, 0)),
                pl.BlockSpec((1, d_lanes), lambda i: (0, 0)),
                pl.BlockSpec((1, d_lanes), lambda i: (0, 0)),
            ],
            out_specs=pl.BlockSpec((row_tile2, d_lanes), lambda i: (i, 0)),
        ),
        compiler_params=pltpu.CompilerParams(
            dimension_semantics=("parallel",),
            vmem_limit_bytes=vmem_limit),
    )(xr, scale_l, shift_l)

    return flat_out.reshape(orig_shape)


seq_bn_forward = jax.jit(_seq_bn_forward,
                         static_argnames=("eps", "fused", "max_row_tile"))


# --------------------------------------------------------------------------
# Reference + test
# --------------------------------------------------------------------------
def _reference(x, gamma, beta, eps=1e-5):
    d = x.shape[-1]
    fx = x.reshape(-1, d).astype(jnp.float32)
    mean = fx.mean(axis=0, keepdims=True)
    var = ((fx - mean) ** 2).mean(axis=0, keepdims=True)
    y = (fx - mean) / jnp.sqrt(var + eps) * gamma + beta
    return y.reshape(x.shape).astype(x.dtype)


def _check(x, gamma, beta, **kw):
    out = jax.block_until_ready(seq_bn_forward(x, gamma, beta, **kw))
    ref = _reference(x, gamma, beta)
    assert out.shape == x.shape and out.dtype == x.dtype
    assert jnp.allclose(out, ref, atol=1e-4, rtol=1e-4)


if __name__ == "__main__":
    def mk(seed, shape, d):
        k1, k2, k3 = jax.random.split(jax.random.PRNGKey(seed), 3)
        x = jax.random.normal(k1, shape, dtype=jnp.float32)
        g = 1.0 + 0.1 * jax.random.normal(k2, (d,), dtype=jnp.float32)
        b = 0.1 * jax.random.normal(k3, (d,), dtype=jnp.float32)
        return x, g, b

    # 1) Small input -> fused single-pass path.  x: (seq, batch, d_model)
    x1, g1, b1 = mk(0, (8, 2, 32), 32)
    _check(x1, g1, b1)

    # 2) Two-pass path, lane repack (d=32 -> g=4), even tile count -> 2-way split.
    x2, g2, b2 = mk(1, (32, 4, 32), 32)
    _check(x2, g2, b2, fused=False, max_row_tile=16)

    # 3) Two-pass path, lcm lane repack (d=48 -> 8 rows x 384 lanes), ragged tile.
    x3, g3, b3 = mk(2, (8, 4, 48), 48)
    _check(x3, g3, b3, fused=False)

    # 4) Two-pass path, no repack (N not divisible), ragged last block masked.
    x4, g4, b4 = mk(3, (7, 3, 48), 48)
    _check(x4, g4, b4, fused=False)

    # 5) Two-pass path, odd tile count (9) -> 2-way split with clamped index map.
    x5, g5, b5 = mk(4, (144, 1, 256), 256)
    _check(x5, g5, b5, fused=False, max_row_tile=16)

    print("KERNEL_OK")
</pallas_src>

<mosaic_0001>
module attributes {stable_mosaic.version = 11 : i64} {
  func.func @_fused_kernel(%arg0: memref<16x32xf32, #tpu.memory_space<vmem>>, %arg1: memref<1x32xf32, #tpu.memory_space<vmem>>, %arg2: memref<1x32xf32, #tpu.memory_space<vmem>>, %arg3: memref<16x32xf32, #tpu.memory_space<vmem>>) attributes {dimension_semantics = [], scalar_prefetch = 0 : i64, scratch_operands = 0 : i64, tpu.core_type = #tpu.core_type<tc>} {
    %c0 = arith.constant 0 : index
    %c0_0 = arith.constant 0 : index
    %0 = vector.load %arg0[%c0, %c0_0] : memref<16x32xf32, #tpu.memory_space<vmem>>, vector<16x32xf32>
    %cst = arith.constant dense<0.000000e+00> : vector<32xf32>
    %1 = vector.multi_reduction <add>, %0, %cst [0] : vector<16x32xf32> to vector<32xf32>
    %2 = vector.shape_cast %1 : vector<32xf32> to vector<1x32xf32>
    %cst_1 = arith.constant 6.250000e-02 : f32
    %3 = vector.broadcast %cst_1 : f32 to vector<1x32xf32>
    %4 = arith.mulf %2, %3 : vector<1x32xf32>
    %5 = arith.mulf %0, %0 : vector<16x32xf32>
    %cst_2 = arith.constant dense<0.000000e+00> : vector<32xf32>
    %6 = vector.multi_reduction <add>, %5, %cst_2 [0] : vector<16x32xf32> to vector<32xf32>
    %7 = vector.shape_cast %6 : vector<32xf32> to vector<1x32xf32>
    %cst_3 = arith.constant 6.250000e-02 : f32
    %8 = vector.broadcast %cst_3 : f32 to vector<1x32xf32>
    %9 = arith.mulf %7, %8 : vector<1x32xf32>
    %10 = arith.mulf %4, %4 : vector<1x32xf32>
    %11 = arith.subf %9, %10 : vector<1x32xf32>
    %cst_4 = arith.constant 0.000000e+00 : f32
    %12 = vector.broadcast %cst_4 : f32 to vector<1x32xf32>
    %13 = arith.maximumf %11, %12 : vector<1x32xf32>
    %c0_5 = arith.constant 0 : index
    %c0_6 = arith.constant 0 : index
    %14 = vector.load %arg1[%c0_5, %c0_6] : memref<1x32xf32, #tpu.memory_space<vmem>>, vector<1x32xf32>
    %cst_7 = arith.constant 9.99999974E-6 : f32
    %15 = vector.broadcast %cst_7 : f32 to vector<1x32xf32>
    %16 = arith.addf %13, %15 : vector<1x32xf32>
    %17 = math.rsqrt %16 : vector<1x32xf32>
    %18 = arith.mulf %14, %17 : vector<1x32xf32>
    %c0_8 = arith.constant 0 : index
    %c0_9 = arith.constant 0 : index
    %19 = vector.load %arg2[%c0_8, %c0_9] : memref<1x32xf32, #tpu.memory_space<vmem>>, vector<1x32xf32>
    %20 = arith.mulf %4, %18 : vector<1x32xf32>
    %21 = arith.subf %19, %20 : vector<1x32xf32>
    %22 = vector.broadcast %18 : vector<1x32xf32> to vector<16x32xf32>
    %23 = arith.mulf %0, %22 : vector<16x32xf32>
    %24 = vector.broadcast %21 : vector<1x32xf32> to vector<16x32xf32>
    %25 = arith.addf %23, %24 : vector<16x32xf32>
    %c0_10 = arith.constant 0 : index
    %c0_11 = arith.constant 0 : index
    %26 = vector.load %arg3[%c0_10, %c0_11] : memref<16x32xf32, #tpu.memory_space<vmem>>, vector<16x32xf32>
    tpu.vector_store %arg3[%c0_10, %c0_11], %25 {strides = array<i32>} : memref<16x32xf32, #tpu.memory_space<vmem>>, vector<16x32xf32>,
    return
  }
}

</mosaic_0001>

<llo_original>
// kernel: _seq_bn_forward.1
$region0: #{_seq_bn_forward.1}
  #allocation0 [shape = 'u32[]', space=smem, size = 0x4, offset = 0x4, fixed_abs, tag = 'smem constant byte address 0x4 - core index']
  #allocation1 [shape = 'u32[144,128]{1,0:T(1,128)}', space=vmem, size = 0x12000, scoped, tag = 'internal scratch']
  %s0 = inlined_call_operand.hbm [shape: f32[16,32], index: 0, kind: input, shape index: {}]
  %s1 = inlined_call_operand.vmem [shape: f32[1,32], index: 1, kind: input, shape index: {}]
  %s2 = inlined_call_operand.vmem [shape: f32[1,32], index: 2, kind: input, shape index: {}]
  %s3 = inlined_call_operand.hbm [shape: f32[16,32], index: 3, kind: output, shape index: {}]
  %s4 = sld [smem:[#allocation0]]
  $region26: #{_seq_bn_forward.1} parent=0
    _
  %s6 = ssub.s32 1, %s4
  %s7 = scalar_select 0, %s6, %s4
  $region1: #{_seq_bn_forward.1} parent=0
    #allocation2 [shape = 'u8[8192]{0}', space=vmem, size = 0x2000, scoped, tag = 'input window, operand 0, single buffered']
    #allocation3 [shape = 's32[1]{0}', space=sflag, size = 0x4, scoped, tag = 'scoped memory for _seq_bn_forward.1']
    #allocation4 [shape = 's32[1]{0}', space=sflag, size = 0x4, scoped, tag = 'scoped memory for _seq_bn_forward.1']
    #allocation5 [shape = 'u8[8192]{0}', space=vmem, size = 0x2000, scoped, tag = 'output window, operand 0, single buffered']
    %8 = vsyncpa [#allocation3], 0
    %9 = vsyncpa [#allocation4], 0
    // Predicated region
    $region2: #{_seq_bn_forward.1} parent=1 // pred_check
      _
    $region3: #{_seq_bn_forward.1} parent=1 // pred_check_branch
      %11 = sbr.rel (0) target = $region5
    $region4: #{_seq_bn_forward.1} parent=1 // pred_region
      %s13 = ssub.s32 256, 256
      %14 = vsyncadd [#allocation3], %s13
      %s15 = sshll.u32 [#allocation2], 4
      %s16 = int_to_ptr.vmem [resolvable:$true] %s15
      %21 = dma.hbm_to_vmem [thread:$0]  %s0, 256, %s16, [#allocation3], 128, 128, 8
    $region5: #{_seq_bn_forward.1} parent=1 // pred_fallthru
      _
    // Predicated region
    $region6: #{_seq_bn_forward.1} parent=1 // pred_check
      _
    $region7: #{_seq_bn_forward.1} parent=1 // pred_check_branch
      %23 = sbr.rel (0) target = $region9
    $region8: #{_seq_bn_forward.1} parent=1 // pred_region
      _
    $region9: #{_seq_bn_forward.1} parent=1 // pred_fallthru
      _
    // Predicated region
    $region10: #{_seq_bn_forward.1} parent=1 // pred_check
      _
    $region11: #{_seq_bn_forward.1} parent=1 // pred_check_branch
      %25 = sbr.rel (0) target = $region13
    $region12: #{_seq_bn_forward.1} parent=1 // pred_region
      _
    $region13: #{_seq_bn_forward.1} parent=1 // pred_fallthru
      _
    // Predicated region
    $region14: #{_seq_bn_forward.1} parent=1 // pred_check
      _
    $region15: #{_seq_bn_forward.1} parent=1 // pred_check_branch
      %27 = sbr.rel (0) target = $region17
    $region16: #{_seq_bn_forward.1} parent=1 // pred_region
      %28 = dma.done [#allocation3], 256
    $region17: #{_seq_bn_forward.1} parent=1 // pred_fallthru
      _
    %v29 = vld [vmem:[#allocation2] sm:$0xff]
    %v30 = vld [vmem:[#allocation2 + $0x8] sm:$0xff]
    %vm31 = vcmask 261120
    %v32 = vsel %vm31, %v29, 0.0
    %v33 = vsel %vm31, %v30, 0.0
    %v34 = vadd.f32 %v32, %v33
    %v35 = vrot.slane %v34, 4
    %v36 = vadd.f32 %v34, %v35
    %v37 = vrot.slane %v36, 2
    %v38 = vadd.f32 %v36, %v37
    %v39 = vrot.slane %v38, 1
    %v40 = vadd.f32 %v38, %v39
    %v41 = vmul.f32 %v40, 0.0625
    %v42 = vmul.f32 %v29, %v29
    %v43 = vmul.f32 %v30, %v30
    %v44 = vsel %vm31, %v42, 0.0
    %v45 = vsel %vm31, %v43, 0.0
    %v46 = vadd.f32 %v44, %v45
    %v47 = vrot.slane %v46, 4
    %v48 = vadd.f32 %v46, %v47
    %v49 = vrot.slane %v48, 2
    %v50 = vadd.f32 %v48, %v49
    %v51 = vrot.slane %v50, 1
    %v52 = vadd.f32 %v50, %v51
    %v53 = vmul.f32 %v52, 0.0625
    %v54 = vmul.f32 %v41, %v41
    %v55 = vsub.f32 %v53, %v54
    %v56 = vmax.f32 %v55, 0.0
    %v57 = vld [vmem:[%s1] sm:$0x1]
    %v58 = vadd.f32 %v56, 1e-05
    %v59 = vrsqrt.pop %v58
    %v60 = vmul.f32 %v57, %v59
    %v61 = vld [vmem:[%s2] sm:$0x1]
    %v62 = vmul.f32 %v41, %v60
    %v63 = vsub.f32 %v61, %v62
    %v65 = vlaneseq
    %v66 = vshrl.u32 %v65, 7
    %v67 = vsub.s32 0, %v66
    %v68 = vrot.slane %v60, %v67
    %v70 = vmul.f32 %v29, %v68
    %v71 = vmul.f32 %v30, %v68
    %v73 = vlaneseq
    %v74 = vshrl.u32 %v73, 7
    %v75 = vsub.s32 0, %v74
    %v76 = vrot.slane %v63, %v75
    %v78 = vadd.f32 %v70, %v76
    %v79 = vadd.f32 %v71, %v76
    %80 = vst.msk [vmem:[#allocation5] sm:$0xff] %vm31, %v78
    %81 = vst.msk [vmem:[#allocation5 + $0x8] sm:$0xff] %vm31, %v79
    // Predicated region
    $region18: #{_seq_bn_forward.1} parent=1 // pred_check
      _
    $region19: #{_seq_bn_forward.1} parent=1 // pred_check_branch
      %83 = sbr.rel (0) target = $region21
    $region20: #{_seq_bn_forward.1} parent=1 // pred_region
      %s85 = ssub.s32 256, 256
      %86 = vsyncadd [#allocation4], %s85
      %s87 = sshll.u32 [#allocation5], 4
      %s88 = int_to_ptr.vmem [resolvable:$true] %s87
      %93 = dma.vmem_to_hbm [thread:$0]  %s88, 256, %s3, [#allocation4], 128, 128, 8
    $region21: #{_seq_bn_forward.1} parent=1 // pred_fallthru
      _
    // Predicated region
    $region22: #{_seq_bn_forward.1} parent=1 // pred_check
      _
    $region23: #{_seq_bn_forward.1} parent=1 // pred_check_branch
      %95 = sbr.rel (0) target = $region25
    $region24: #{_seq_bn_forward.1} parent=1 // pred_region
      %96 = dma.done [#allocation4], 256
    $region25: #{_seq_bn_forward.1} parent=1 // pred_fallthru
      _
    %97 = vsyncpa [#allocation3], 1
    %98 = vsyncpa [#allocation4], 1

</llo_original>
